<compile_context>
chip_gen: v6e
topology: v6e:2x2x1
jax: 0.10.0
libtpu: 0.0.40
codegen_flags: <defaults>
</compile_context>

<pallas_src>
import numpy as np
import jax
import jax.numpy as jnp
from jax.experimental import pallas as pl
from jax.experimental.pallas import tpu as pltpu

# ----------------------------- model hyperparameters -----------------------------
NOBJECTS = 6
NCOMBOS = 4
NTOTAL = NOBJECTS + NCOMBOS          # CoLa output objects (10)
NFEAT = 5                            # masses, ptsq, weighted_e, weighted_d, weighted_pz
NEXTRA = 0
NSCALARS = 0
D_IN = NTOTAL * (NFEAT + NEXTRA) + NSCALARS   # 50
HIDDEN = 32                          # fflayers=[32]
NOUT = 3
BATCH = 8
BN_EPS = 1e-5
METRIC = (-1.0, -1.0, -1.0, 1.0)     # torch.diag([-1,-1,-1,1])

# packed-parameter slab layout (row starts are sublane(8)-aligned)
_WA_WBIG_ROW = 8                     # wa: combo.T at rows [0:6], big slab at [8:8+NTOTAL]
_WA_ROWS = _WA_WBIG_ROW + NTOTAL     # 18
_WB_B1_ROW = 56                      # wb: w1' at [0:50], b1' at row 56
_WB_W2_ROW = 64                      # w2 at [64:96]
_WB_B2_ROW = _WB_W2_ROW + HIDDEN     # b2 at row 96
_WB_ROWS = 104


# ----------------------------------- kernel --------------------------------------
def _colalola_kernel(v_ref, wa_ref, wb_ref, out_ref):
    bt = v_ref.shape[1]
    nt = NTOTAL

    # --- CoLa: single (4*bt, nobj) @ (nobj, nt) matmul ---
    v2d = v_ref[...].reshape(4 * bt, NOBJECTS)
    combo_t = wa_ref[0:NOBJECTS, 0:nt]                                   # (6, 10)
    c_all = jnp.dot(v2d, combo_t, preferred_element_type=jnp.float32)    # (4*bt, 10)
    c0 = c_all[0 * bt:1 * bt]
    c1 = c_all[1 * bt:2 * bt]
    c2 = c_all[2 * bt:3 * bt]
    c3 = c_all[3 * bt:4 * bt]

    masses = -c0 * c0 - c1 * c1 - c2 * c2 + c3 * c3                      # metric (-1,-1,-1,1)
    ptsq = c1 * c1 + c2 * c2

    # --- one stacked matmul covers all Dk, masses@W, weighted_e and weighted_pz ---
    stacked = jnp.concatenate([c_all, masses], axis=0)                   # (5*bt, nt)
    w_big = wa_ref[_WA_WBIG_ROW:_WA_WBIG_ROW + nt, :]                    # (nt, 3*nt)
    big = jnp.dot(stacked, w_big, preferred_element_type=jnp.float32)    # (5*bt, 3*nt)

    d0 = big[0 * bt:1 * bt, 0:nt]
    d1 = big[1 * bt:2 * bt, 0:nt]
    d2 = big[2 * bt:3 * bt, 0:nt]
    d3 = big[3 * bt:4 * bt, 0:nt]
    m_row = big[4 * bt:5 * bt, 0:nt]
    w_e = big[0 * bt:1 * bt, nt:2 * nt]
    w_pz = big[3 * bt:4 * bt, 2 * nt:3 * nt]

    cross = -c0 * d0 - c1 * d1 - c2 * d2 + c3 * d3
    # rowsum term is folded into w_dist' = w_dist.T - diag(rowsum) in the wrapper:
    w_d = m_row - 2.0 * cross

    feats = jnp.concatenate([masses, ptsq, w_e, w_d, w_pz], axis=1)      # (bt, 50)

    # --- head (BatchNorm folded into w1'/b1') ---
    w1 = wb_ref[0:D_IN, :]                                               # (50, 32)
    b1 = wb_ref[_WB_B1_ROW:_WB_B1_ROW + 1, :]                            # (1, 32)
    w2 = wb_ref[_WB_W2_ROW:_WB_W2_ROW + HIDDEN, 0:NOUT]                  # (32, 3)
    b2 = wb_ref[_WB_B2_ROW:_WB_B2_ROW + 1, 0:NOUT]                       # (1, 3)

    h = jnp.maximum(jnp.dot(feats, w1, preferred_element_type=jnp.float32) + b1, 0.0)
    out_ref[...] = jnp.dot(h, w2, preferred_element_type=jnp.float32) + b2


# ---------------------------------- wrapper ---------------------------------------
def _pack_params(params):
    identity = jnp.eye(NOBJECTS, dtype=jnp.float32)
    combo = jnp.concatenate([identity, params["w_combo"].astype(jnp.float32)], axis=0)

    w_dist = params["w_dist"].astype(jnp.float32)
    rowsum = jnp.sum(w_dist, axis=1)                     # rowsum[n] = sum_m w_dist[n, m]
    w_dist_mod_t = w_dist.T - jnp.diag(rowsum)           # folds the masses*rowsum term
    w_big = jnp.concatenate(
        [w_dist_mod_t,
         params["w_ener"].T.astype(jnp.float32),
         params["w_pid"].T.astype(jnp.float32)], axis=1)  # (nt, 3*nt)

    wa = jnp.zeros((_WA_ROWS, 3 * NTOTAL), jnp.float32)
    wa = wa.at[0:NOBJECTS, 0:NTOTAL].set(combo.T)
    wa = wa.at[_WA_WBIG_ROW:_WA_WBIG_ROW + NTOTAL, :].set(w_big)

    # fold eval-mode BatchNorm into the first Linear; absorb the torch object-major
    # flattening order (n*NFEAT + f) via a row permutation into kernel order (f*nt + n).
    perm = np.array([(j % NTOTAL) * NFEAT + (j // NTOTAL) for j in range(D_IN)],
                    dtype=np.int32)
    scale = params["gamma"] * jax.lax.rsqrt(params["rvar"] + BN_EPS)
    shift = params["beta"] - params["rmean"] * scale
    w1_eff = scale[perm][:, None] * params["w1"][perm, :]
    b1_eff = params["b1"] + shift @ params["w1"]

    wb = jnp.zeros((_WB_ROWS, HIDDEN), jnp.float32)
    wb = wb.at[0:D_IN, :].set(w1_eff.astype(jnp.float32))
    wb = wb.at[_WB_B1_ROW, :].set(b1_eff.astype(jnp.float32))
    wb = wb.at[_WB_W2_ROW:_WB_W2_ROW + HIDDEN, 0:NOUT].set(params["w2"].astype(jnp.float32))
    wb = wb.at[_WB_B2_ROW, 0:NOUT].set(params["b2"].astype(jnp.float32))
    return wa, wb


def colalola_forward(vectors, params, *, batch_tile=1024):
    B = vectors.shape[0]
    # (B, nobjects*4) -> (4, B, nobjects)  (component-major for the kernel)
    v = vectors.reshape(B, NOBJECTS, 4).transpose(2, 0, 1).astype(jnp.float32)
    wa, wb = _pack_params(params)

    bt = B if B <= batch_tile else batch_tile            # batch tile (multiple of 8 when tiled)
    grid = (pl.cdiv(B, bt),)

    return pl.pallas_call(
        _colalola_kernel,
        out_shape=jax.ShapeDtypeStruct((B, NOUT), jnp.float32),
        grid=grid,
        in_specs=[
            pl.BlockSpec((4, bt, NOBJECTS), lambda i: (0, i, 0)),
            pl.BlockSpec((_WA_ROWS, 3 * NTOTAL), lambda i: (0, 0)),   # weights: constant block
            pl.BlockSpec((_WB_ROWS, HIDDEN), lambda i: (0, 0)),
        ],
        out_specs=pl.BlockSpec((bt, NOUT), lambda i: (i, 0)),
        compiler_params=pltpu.CompilerParams(dimension_semantics=("parallel",)),
    )(v, wa, wb)


# ------------------------- pure-JAX reference (torch semantics) -------------------
def reference_forward(vectors, params):
    B = vectors.shape[0]
    v = vectors.reshape(B, NOBJECTS, 4)
    combo = jnp.concatenate([jnp.eye(NOBJECTS, dtype=jnp.float32), params["w_combo"]], axis=0)
    cv = jnp.einsum("ij,bjk->bik", combo, v)
    w_e = jnp.einsum("ij,bj->bi", params["w_ener"], cv[:, :, 0])
    w_pz = jnp.einsum("ij,bj->bi", params["w_pid"], cv[:, :, 3])
    metric = jnp.diag(jnp.array(METRIC, jnp.float32))
    a = jnp.repeat(cv[:, :, None, :], NTOTAL, axis=2)
    b = jnp.repeat(cv[:, None, :, :], NTOTAL, axis=1)
    diff = a - b
    dist = jnp.einsum("bnmi,ij,bnmj->bnm", diff, metric, diff)
    w_d = jnp.einsum("nm,bnm->bn", params["w_dist"], dist)
    masses = jnp.einsum("bni,ij,bnj->bn", cv, metric, cv)
    ptsq = cv[:, :, 1] ** 2 + cv[:, :, 2] ** 2
    feats = jnp.stack([masses, ptsq, w_e, w_d, w_pz], axis=-1).reshape(B, -1)
    xn = ((feats - params["rmean"]) / jnp.sqrt(params["rvar"] + BN_EPS)
          * params["gamma"] + params["beta"])
    h = jnp.maximum(xn @ params["w1"] + params["b1"], 0.0)
    return h @ params["w2"] + params["b2"]


# --------------------------- deterministic parameter init -------------------------
def make_params(key):
    ks = jax.random.split(key, 8)
    return dict(
        w_combo=jax.random.normal(ks[0], (NCOMBOS, NOBJECTS), jnp.float32),
        w_dist=jax.random.normal(ks[1], (NTOTAL, NTOTAL), jnp.float32),
        w_ener=jax.random.normal(ks[2], (NTOTAL, NTOTAL), jnp.float32),
        w_pid=jax.random.normal(ks[3], (NTOTAL, NTOTAL), jnp.float32),
        w1=0.1 * jax.random.normal(ks[4], (D_IN, HIDDEN), jnp.float32),
        b1=0.1 * jax.random.normal(ks[5], (HIDDEN,), jnp.float32),
        w2=0.1 * jax.random.normal(ks[6], (HIDDEN, NOUT), jnp.float32),
        b2=0.1 * jax.random.normal(ks[7], (NOUT,), jnp.float32),
        gamma=jnp.ones((D_IN,), jnp.float32),
        beta=jnp.zeros((D_IN,), jnp.float32),
        rmean=jnp.zeros((D_IN,), jnp.float32),
        rvar=jnp.ones((D_IN,), jnp.float32),
    )


if __name__ == "__main__":
    key = jax.random.PRNGKey(0)
    kp, kx = jax.random.split(key)
    params = make_params(kp)
    vectors = jax.random.normal(kx, (BATCH, NOBJECTS * (4 + NEXTRA)), jnp.float32)

    out = colalola_forward(vectors, params)
    out = jax.block_until_ready(out)

    with jax.default_matmul_precision("highest"):
        ref = jax.block_until_ready(reference_forward(vectors, params))

    np.testing.assert_allclose(np.asarray(out), np.asarray(ref), rtol=2e-3, atol=5e-2)
    print("KERNEL_OK")
</pallas_src>

<mosaic_0001>
module attributes {stable_mosaic.version = 11 : i64} {
  func.func @_colalola_kernel(%arg0: i32, %arg1: memref<4x8x6xf32, #tpu.memory_space<vmem>>, %arg2: memref<18x30xf32, #tpu.memory_space<vmem>>, %arg3: memref<104x32xf32, #tpu.memory_space<vmem>>, %arg4: memref<8x3xf32, #tpu.memory_space<vmem>>) attributes {dimension_semantics = [#tpu.dimension_semantics<parallel>], iteration_bounds = array<i64: 1>, scalar_prefetch = 0 : i64, scratch_operands = 0 : i64, tpu.core_type = #tpu.core_type<tc>, window_params = [{transform_indices = @transform_0, window_bounds = array<i64: 4, 8, 6>}, {pipeline_mode = #tpu.pipeline_mode<synchronous>, transform_indices = @transform_1, window_bounds = array<i64: 18, 30>}, {pipeline_mode = #tpu.pipeline_mode<synchronous>, transform_indices = @transform_2, window_bounds = array<i64: 104, 32>}, {transform_indices = @transform_3, window_bounds = array<i64: 8, 3>}]} {
    %c0 = arith.constant 0 : index
    %c0_0 = arith.constant 0 : index
    %c0_1 = arith.constant 0 : index
    %0 = vector.load %arg1[%c0, %c0_0, %c0_1] : memref<4x8x6xf32, #tpu.memory_space<vmem>>, vector<4x8x6xf32>
    %1 = vector.shape_cast %0 : vector<4x8x6xf32> to vector<32x6xf32>
    %c0_2 = arith.constant 0 : index
    %c0_3 = arith.constant 0 : index
    %2 = vector.load %arg2[%c0_2, %c0_3] : memref<18x30xf32, #tpu.memory_space<vmem>>, vector<6x10xf32>
    %cst = arith.constant dense<0.000000e+00> : vector<32x10xf32>
    %3 = tpu.matmul %1, %2, %cst {dimension_numbers = #tpu.dot_dimension_numbers<[1], [0], [0], [1], [0, 0, 1, 1], [], []>} : vector<32x6xf32>, vector<6x10xf32>, vector<32x10xf32> -> vector<32x10xf32>
    %4 = vector.extract_strided_slice %3 {offsets = [0, 0], sizes = [8, 10], strides = [1, 1]} : vector<32x10xf32> to vector<8x10xf32>
    %5 = vector.extract_strided_slice %3 {offsets = [8, 0], sizes = [8, 10], strides = [1, 1]} : vector<32x10xf32> to vector<8x10xf32>
    %6 = vector.extract_strided_slice %3 {offsets = [16, 0], sizes = [8, 10], strides = [1, 1]} : vector<32x10xf32> to vector<8x10xf32>
    %7 = vector.extract_strided_slice %3 {offsets = [24, 0], sizes = [8, 10], strides = [1, 1]} : vector<32x10xf32> to vector<8x10xf32>
    %cst_4 = arith.constant 0.000000e+00 : f32
    %8 = vector.broadcast %cst_4 : f32 to vector<8x10xf32>
    %9 = arith.subf %8, %4 : vector<8x10xf32>
    %10 = arith.mulf %9, %4 : vector<8x10xf32>
    %11 = arith.mulf %5, %5 : vector<8x10xf32>
    %12 = arith.subf %10, %11 : vector<8x10xf32>
    %13 = arith.mulf %6, %6 : vector<8x10xf32>
    %14 = arith.subf %12, %13 : vector<8x10xf32>
    %15 = arith.mulf %7, %7 : vector<8x10xf32>
    %16 = arith.addf %14, %15 : vector<8x10xf32>
    %17 = arith.mulf %5, %5 : vector<8x10xf32>
    %18 = arith.mulf %6, %6 : vector<8x10xf32>
    %19 = arith.addf %17, %18 : vector<8x10xf32>
    %20 = tpu.concatenate %3, %16 in 0 : vector<32x10xf32>, vector<8x10xf32> -> vector<40x10xf32>
    %c8 = arith.constant 8 : index
    %c0_5 = arith.constant 0 : index
    %21 = vector.load %arg2[%c8, %c0_5] : memref<18x30xf32, #tpu.memory_space<vmem>>, vector<10x30xf32>
    %cst_6 = arith.constant dense<0.000000e+00> : vector<40x30xf32>
    %22 = tpu.matmul %20, %21, %cst_6 {dimension_numbers = #tpu.dot_dimension_numbers<[1], [0], [0], [1], [0, 0, 1, 1], [], []>} : vector<40x10xf32>, vector<10x30xf32>, vector<40x30xf32> -> vector<40x30xf32>
    %23 = vector.extract_strided_slice %22 {offsets = [0, 0], sizes = [8, 10], strides = [1, 1]} : vector<40x30xf32> to vector<8x10xf32>
    %24 = vector.extract_strided_slice %22 {offsets = [8, 0], sizes = [8, 10], strides = [1, 1]} : vector<40x30xf32> to vector<8x10xf32>
    %25 = vector.extract_strided_slice %22 {offsets = [16, 0], sizes = [8, 10], strides = [1, 1]} : vector<40x30xf32> to vector<8x10xf32>
    %26 = vector.extract_strided_slice %22 {offsets = [24, 0], sizes = [8, 10], strides = [1, 1]} : vector<40x30xf32> to vector<8x10xf32>
    %27 = vector.extract_strided_slice %22 {offsets = [32, 0], sizes = [8, 10], strides = [1, 1]} : vector<40x30xf32> to vector<8x10xf32>
    %28 = vector.extract_strided_slice %22 {offsets = [0, 10], sizes = [8, 10], strides = [1, 1]} : vector<40x30xf32> to vector<8x10xf32>
    %29 = vector.extract_strided_slice %22 {offsets = [24, 20], sizes = [8, 10], strides = [1, 1]} : vector<40x30xf32> to vector<8x10xf32>
    %cst_7 = arith.constant 0.000000e+00 : f32
    %30 = vector.broadcast %cst_7 : f32 to vector<8x10xf32>
    %31 = arith.subf %30, %4 : vector<8x10xf32>
    %32 = arith.mulf %31, %23 : vector<8x10xf32>
    %33 = arith.mulf %5, %24 : vector<8x10xf32>
    %34 = arith.subf %32, %33 : vector<8x10xf32>
    %35 = arith.mulf %6, %25 : vector<8x10xf32>
    %36 = arith.subf %34, %35 : vector<8x10xf32>
    %37 = arith.mulf %7, %26 : vector<8x10xf32>
    %38 = arith.addf %36, %37 : vector<8x10xf32>
    %cst_8 = arith.constant 2.000000e+00 : f32
    %39 = vector.broadcast %cst_8 : f32 to vector<8x10xf32>
    %40 = arith.mulf %39, %38 : vector<8x10xf32>
    %41 = arith.subf %27, %40 : vector<8x10xf32>
    %42 = tpu.concatenate %16, %19, %28, %41, %29 in 1 : vector<8x10xf32>, vector<8x10xf32>, vector<8x10xf32>, vector<8x10xf32>, vector<8x10xf32> -> vector<8x50xf32>
    %c0_9 = arith.constant 0 : index
    %c0_10 = arith.constant 0 : index
    %43 = vector.load %arg3[%c0_9, %c0_10] : memref<104x32xf32, #tpu.memory_space<vmem>>, vector<50x32xf32>
    %c56 = arith.constant 56 : index
    %c0_11 = arith.constant 0 : index
    %44 = vector.load %arg3[%c56, %c0_11] : memref<104x32xf32, #tpu.memory_space<vmem>>, vector<1x32xf32>
    %c64 = arith.constant 64 : index
    %c0_12 = arith.constant 0 : index
    %45 = vector.load %arg3[%c64, %c0_12] : memref<104x32xf32, #tpu.memory_space<vmem>>, vector<32x3xf32>
    %c96 = arith.constant 96 : index
    %c0_13 = arith.constant 0 : index
    %46 = vector.load %arg3[%c96, %c0_13] : memref<104x32xf32, #tpu.memory_space<vmem>>, vector<1x3xf32>
    %cst_14 = arith.constant dense<0.000000e+00> : vector<8x32xf32>
    %47 = tpu.matmul %42, %43, %cst_14 {dimension_numbers = #tpu.dot_dimension_numbers<[1], [0], [0], [1], [0, 0, 1, 1], [], []>} : vector<8x50xf32>, vector<50x32xf32>, vector<8x32xf32> -> vector<8x32xf32>
    %48 = vector.broadcast %44 : vector<1x32xf32> to vector<8x32xf32>
    %49 = arith.addf %47, %48 : vector<8x32xf32>
    %cst_15 = arith.constant 0.000000e+00 : f32
    %50 = vector.broadcast %cst_15 : f32 to vector<8x32xf32>
    %51 = arith.maximumf %49, %50 : vector<8x32xf32>
    %cst_16 = arith.constant dense<0.000000e+00> : vector<8x3xf32>
    %52 = tpu.matmul %51, %45, %cst_16 {dimension_numbers = #tpu.dot_dimension_numbers<[1], [0], [0], [1], [0, 0, 1, 1], [], []>} : vector<8x32xf32>, vector<32x3xf32>, vector<8x3xf32> -> vector<8x3xf32>
    %53 = vector.broadcast %46 : vector<1x3xf32> to vector<8x3xf32>
    %54 = arith.addf %52, %53 : vector<8x3xf32>
    %c0_17 = arith.constant 0 : index
    %c0_18 = arith.constant 0 : index
    %55 = vector.load %arg4[%c0_17, %c0_18] : memref<8x3xf32, #tpu.memory_space<vmem>>, vector<8x3xf32>
    tpu.vector_store %arg4[%c0_17, %c0_18], %54 {strides = array<i32>} : memref<8x3xf32, #tpu.memory_space<vmem>>, vector<8x3xf32>,
    return
  }
  func.func @transform_0(%arg0: i32) -> (i32, i32, i32) {
    %c0_i32 = arith.constant 0 : i32
    %c0_i32_0 = arith.constant 0 : i32
    %c0_i32_1 = arith.constant 0 : i32
    return %c0_i32, %arg0, %c0_i32_0 : i32, i32, i32
  }
  func.func @transform_1(%arg0: i32) -> (i32, i32) {
    %c0_i32 = arith.constant 0 : i32
    %c0_i32_0 = arith.constant 0 : i32
    %c0_i32_1 = arith.constant 0 : i32
    return %c0_i32, %c0_i32_0 : i32, i32
  }
  func.func @transform_2(%arg0: i32) -> (i32, i32) {
    %c0_i32 = arith.constant 0 : i32
    %c0_i32_0 = arith.constant 0 : i32
    %c0_i32_1 = arith.constant 0 : i32
    return %c0_i32, %c0_i32_0 : i32, i32
  }
  func.func @transform_3(%arg0: i32) -> (i32, i32) {
    %c0_i32 = arith.constant 0 : i32
    %c0_i32_0 = arith.constant 0 : i32
    return %arg0, %c0_i32 : i32, i32
  }
}

</mosaic_0001>

<llo_original>
// kernel: tpu_custom_call.1
$region0: #{tpu_custom_call.1}
  #allocation0 [shape = 'u32[]', space=smem, size = 0x4, offset = 0x4, fixed_abs, tag = 'smem constant byte address 0x4 - core index']
  #allocation1 [shape = 'u32[144,128]{1,0:T(1,128)}', space=vmem, size = 0x12000, scoped, tag = 'internal scratch']
  %s0 = inlined_call_operand.vmem [shape: f32[4,8,6], index: 0, kind: input, shape index: {}]
  %s1 = inlined_call_operand.vmem [shape: f32[18,30], index: 1, kind: input, shape index: {}]
  %s2 = inlined_call_operand.vmem [shape: f32[104,32], index: 2, kind: input, shape index: {}]
  %s3 = inlined_call_operand.vmem [shape: f32[8,3], index: 3, kind: output, shape index: {}]
  %s4 = sld [smem:[#allocation0]]
  $region22: #{tpu_custom_call.1} parent=0
    _
  %s6 = ssub.s32 1, %s4
  %s7 = scalar_select 0, %s6, %s4
  // Predicated region
  $region2: #{tpu_custom_call.1} parent=0 // pred_check
    _
  $region3: #{tpu_custom_call.1} parent=0 // pred_check_branch
    %9 = sbr.rel (0) target = $region5
  $region4: #{tpu_custom_call.1} parent=0 // pred_region
    _
  $region5: #{tpu_custom_call.1} parent=0 // pred_fallthru
    _
  // Predicated region
  $region6: #{tpu_custom_call.1} parent=0 // pred_check
    _
  $region7: #{tpu_custom_call.1} parent=0 // pred_check_branch
    %11 = sbr.rel (0) target = $region9
  $region8: #{tpu_custom_call.1} parent=0 // pred_region
    _
  $region9: #{tpu_custom_call.1} parent=0 // pred_fallthru
    _
  // Predicated region
  $region10: #{tpu_custom_call.1} parent=0 // pred_check
    _
  $region11: #{tpu_custom_call.1} parent=0 // pred_check_branch
    %13 = sbr.rel (0) target = $region13
  $region12: #{tpu_custom_call.1} parent=0 // pred_region
    _
  $region13: #{tpu_custom_call.1} parent=0 // pred_fallthru
    _
  %v14 = vld [vmem:[%s0] sm:$0xff]
  %v15 = vld [vmem:[%s0 + $0x8] sm:$0xff]
  %v16 = vld [vmem:[%s0 + $0x10] sm:$0xff]
  %v17 = vld [vmem:[%s0 + $0x18] sm:$0xff]
  %v18 = vld [vmem:[%s1] sm:$0x3f]
  %vm19 = vcmask 48128
  %v21 = vsel %vm19, %v14, 0
  %v24 = vsel %vm19, %v15, 0
  %v27 = vsel %vm19, %v16, 0
  %v30 = vsel %vm19, %v17, 0
  %vm32 = vcmask 1045504
  %v34 = vsel %vm32, %v18, 0
  %36 = vmatprep.subr.mxu0 0.0
  %37 = vmatpush1.msra.mxu0 0.0
  %38 = vmatprep.subr.mxu0 0.0
  %39 = vmatpush1.msra.mxu0 0.0
  %40 = vmatprep.subr.mxu0 0.0
  %41 = vmatpush1.msra.mxu0 0.0
  %42 = vmatprep.subr.mxu0 0.0
  %43 = vmatpush1.msra.mxu0 0.0
  %44 = vmatprep.subr.mxu0 0.0
  %45 = vmatpush1.msra.mxu0 0.0
  %46 = vmatprep.subr.mxu0 0.0
  %47 = vmatpush1.msra.mxu0 0.0
  %48 = vmatprep.subr.mxu0 0.0
  %49 = vmatpush1.msra.mxu0 0.0
  %50 = vmatprep.subr.mxu0 0.0
  %51 = vmatpush1.msra.mxu0 0.0
  %52 = vmatprep.subr.mxu0 0.0
  %53 = vmatpush1.msra.mxu0 0.0
  %54 = vmatprep.subr.mxu0 0.0
  %55 = vmatpush1.msra.mxu0 0.0
  %56 = vmatprep.subr.mxu0 0.0
  %57 = vmatpush1.msra.mxu0 0.0
  %58 = vmatprep.subr.mxu0 0.0
  %59 = vmatpush1.msra.mxu0 0.0
  %60 = vmatprep.subr.mxu0 0.0
  %61 = vmatpush1.msra.mxu0 0.0
  %62 = vmatprep.subr.mxu0 0.0
  %63 = vmatpush1.msra.mxu0 0.0
  %64 = vmatprep.subr.mxu0 0.0
  %65 = vmatpush1.msra.mxu0 0.0
  %66 = vmatprep.subr.mxu0 0.0
  %67 = vmatpush1.msra.mxu0 %v34
  %68 = vmatprep.subr.mxu0 0.0
  %69 = vmatpush2.msra.mxu0 0.0
  %70 = vmatprep.subr.mxu0 0.0
  %71 = vmatpush2.msra.mxu0 0.0
  %72 = vmatprep.subr.mxu0 0.0
  %73 = vmatpush2.msra.mxu0 0.0
  %74 = vmatprep.subr.mxu0 0.0
  %75 = vmatpush2.msra.mxu0 0.0
  %76 = vmatprep.subr.mxu0 0.0
  %77 = vmatpush2.msra.mxu0 0.0
  %78 = vmatprep.subr.mxu0 0.0
  %79 = vmatpush2.msra.mxu0 0.0
  %80 = vmatprep.subr.mxu0 0.0
  %81 = vmatpush2.msra.mxu0 0.0
  %82 = vmatprep.subr.mxu0 0.0
  %83 = vmatpush2.msra.mxu0 0.0
  %84 = vmatprep.subr.mxu0 0.0
  %85 = vmatpush2.msra.mxu0 0.0
  %86 = vmatprep.subr.mxu0 0.0
  %87 = vmatpush2.msra.mxu0 0.0
  %88 = vmatprep.subr.mxu0 0.0
  %89 = vmatpush2.msra.mxu0 0.0
  %90 = vmatprep.subr.mxu0 0.0
  %91 = vmatpush2.msra.mxu0 0.0
  %92 = vmatprep.subr.mxu0 0.0
  %93 = vmatpush2.msra.mxu0 0.0
  %94 = vmatprep.subr.mxu0 0.0
  %95 = vmatpush2.msra.mxu0 0.0
  %96 = vmatprep.subr.mxu0 0.0
  %97 = vmatpush2.msra.mxu0 0.0
  %98 = vmatprep.subr.mxu0 0.0
  %99 = vmatpush2.msra.mxu0 0.0
  %100 = vmatprep.mubr.f32.mxu0 0.0
  %101 = vmatmul.mubr.f32.gmra.mxu0 %v21
  %v102 = vpop.f32.mrf.mxu0
  %v103 = vadd.f32 0.0, %v102
  %v104 = vpop.f32.mrf.mxu0
  %105 = vmatprep.mubr.f32.mxu0 0.0
  %106 = vmatmul.mubr.f32.gmra.mxu0 %v24
  %v107 = vpop.f32.mrf.mxu0
  %v108 = vadd.f32 0.0, %v107
  %v109 = vpop.f32.mrf.mxu0
  %110 = vmatprep.mubr.f32.mxu0 0.0
  %111 = vmatmul.mubr.f32.gmra.mxu0 %v27
  %v112 = vpop.f32.mrf.mxu0
  %v113 = vadd.f32 0.0, %v112
  %v114 = vpop.f32.mrf.mxu0
  %115 = vmatprep.mubr.f32.mxu0 0.0
  %116 = vmatmul.mubr.f32.gmra.mxu0 %v30
  %v117 = vpop.f32.mrf.mxu0
  %v118 = vadd.f32 0.0, %v117
  %v119 = vpop.f32.mrf.mxu0
  %120 = vdwg.mxu0
  %v121 = vsub.f32 0.0, %v103
  %v122 = vmul.f32 %v121, %v103
  %v123 = vmul.f32 %v108, %v108
  %v124 = vsub.f32 %v122, %v123
  %v125 = vmul.f32 %v113, %v113
  %v126 = vsub.f32 %v124, %v125
  %v127 = vmul.f32 %v118, %v118
  %v128 = vadd.f32 %v126, %v127
  %v129 = vadd.f32 %v123, %v125
  %v130 = vld [vmem:[%s1 + $0x8] sm:$0xff]
  %v131 = vld [vmem:[%s1 + $0x10] sm:$0x3]
  %vm132 = vcmask 80896
  %v134 = vsel %vm132, %v103, 0
  %v137 = vsel %vm132, %v108, 0
  %v140 = vsel %vm132, %v113, 0
  %v143 = vsel %vm132, %v118, 0
  %v146 = vsel %vm132, %v128, 0
  %vm148 = vcmask 1041408
  %v150 = vsel %vm148, %v131, 0
  %152 = vmatprep.subr.mxu0 0.0
  %153 = vmatpush1.msra.mxu0 0.0
  %154 = vmatprep.subr.mxu0 0.0
  %155 = vmatpush1.msra.mxu0 0.0
  %156 = vmatprep.subr.mxu0 0.0
  %157 = vmatpush1.msra.mxu0 0.0
  %158 = vmatprep.subr.mxu0 0.0
  %159 = vmatpush1.msra.mxu0 0.0
  %160 = vmatprep.subr.mxu0 0.0
  %161 = vmatpush1.msra.mxu0 0.0
  %162 = vmatprep.subr.mxu0 0.0
  %163 = vmatpush1.msra.mxu0 0.0
  %164 = vmatprep.subr.mxu0 0.0
  %165 = vmatpush1.msra.mxu0 0.0
  %166 = vmatprep.subr.mxu0 0.0
  %167 = vmatpush1.msra.mxu0 0.0
  %168 = vmatprep.subr.mxu0 0.0
  %169 = vmatpush1.msra.mxu0 0.0
  %170 = vmatprep.subr.mxu0 0.0
  %171 = vmatpush1.msra.mxu0 0.0
  %172 = vmatprep.subr.mxu0 0.0
  %173 = vmatpush1.msra.mxu0 0.0
  %174 = vmatprep.subr.mxu0 0.0
  %175 = vmatpush1.msra.mxu0 0.0
  %176 = vmatprep.subr.mxu0 0.0
  %177 = vmatpush1.msra.mxu0 0.0
  %178 = vmatprep.subr.mxu0 0.0
  %179 = vmatpush1.msra.mxu0 0.0
  %180 = vmatprep.subr.mxu0 0.0
  %181 = vmatpush1.msra.mxu0 %v150
  %182 = vmatprep.subr.mxu0 0.0
  %183 = vmatpush1.msra.mxu0 %v130
  %184 = vmatprep.subr.mxu0 0.0
  %185 = vmatpush2.msra.mxu0 0.0
  %186 = vmatprep.subr.mxu0 0.0
  %187 = vmatpush2.msra.mxu0 0.0
  %188 = vmatprep.subr.mxu0 0.0
  %189 = vmatpush2.msra.mxu0 0.0
  %190 = vmatprep.subr.mxu0 0.0
  %191 = vmatpush2.msra.mxu0 0.0
  %192 = vmatprep.subr.mxu0 0.0
  %193 = vmatpush2.msra.mxu0 0.0
  %194 = vmatprep.subr.mxu0 0.0
  %195 = vmatpush2.msra.mxu0 0.0
  %196 = vmatprep.subr.mxu0 0.0
  %197 = vmatpush2.msra.mxu0 0.0
  %198 = vmatprep.subr.mxu0 0.0
  %199 = vmatpush2.msra.mxu0 0.0
  %200 = vmatprep.subr.mxu0 0.0
  %201 = vmatpush2.msra.mxu0 0.0
  %202 = vmatprep.subr.mxu0 0.0
  %203 = vmatpush2.msra.mxu0 0.0
  %204 = vmatprep.subr.mxu0 0.0
  %205 = vmatpush2.msra.mxu0 0.0
  %206 = vmatprep.subr.mxu0 0.0
  %207 = vmatpush2.msra.mxu0 0.0
  %208 = vmatprep.subr.mxu0 0.0
  %209 = vmatpush2.msra.mxu0 0.0
  %210 = vmatprep.subr.mxu0 0.0
  %211 = vmatpush2.msra.mxu0 0.0
  %212 = vmatprep.subr.mxu0 0.0
  %213 = vmatpush2.msra.mxu0 0.0
  %214 = vmatprep.subr.mxu0 0.0
  %215 = vmatpush2.msra.mxu0 0.0
  %216 = vmatprep.mubr.f32.mxu0 0.0
  %217 = vmatmul.mubr.f32.gmra.mxu0 %v134
  %v218 = vpop.f32.mrf.mxu0
  %v219 = vadd.f32 0.0, %v218
  %v220 = vpop.f32.mrf.mxu0
  %221 = vmatprep.mubr.f32.mxu0 0.0
  %222 = vmatmul.mubr.f32.gmra.mxu0 %v137
  %v223 = vpop.f32.mrf.mxu0
  %v224 = vadd.f32 0.0, %v223
  %v225 = vpop.f32.mrf.mxu0
  %226 = vmatprep.mubr.f32.mxu0 0.0
  %227 = vmatmul.mubr.f32.gmra.mxu0 %v140
  %v228 = vpop.f32.mrf.mxu0
  %v229 = vadd.f32 0.0, %v228
  %v230 = vpop.f32.mrf.mxu0
  %231 = vmatprep.mubr.f32.mxu0 0.0
  %232 = vmatmul.mubr.f32.gmra.mxu0 %v143
  %v233 = vpop.f32.mrf.mxu0
  %v234 = vadd.f32 0.0, %v233
  %v235 = vpop.f32.mrf.mxu0
  %236 = vmatprep.mubr.f32.mxu0 0.0
  %237 = vmatmul.mubr.f32.gmra.mxu0 %v146
  %v238 = vpop.f32.mrf.mxu0
  %v239 = vadd.f32 0.0, %v238
  %v240 = vpop.f32.mrf.mxu0
  %241 = vdwg.mxu0
  %v242 = vmul.f32 %v121, %v219
  %v243 = vmul.f32 %v108, %v224
  %v244 = vsub.f32 %v242, %v243
  %v245 = vmul.f32 %v113, %v229
  %v246 = vsub.f32 %v244, %v245
  %v247 = vmul.f32 %v118, %v234
  %v248 = vadd.f32 %v246, %v247
  %v249 = vmul.f32 %v248, 2.0
  %v250 = vsub.f32 %v239, %v249
  %252 = vrot.lane.b32.xlu0 %v129, 10
  %v253 = vpop.permute.xlu0 %252
  %256 = vrot.lane.b32.xlu0 %v219, 10
  %v257 = vpop.permute.xlu0 %256
  %260 = vrot.lane.b32.xlu0 %v250, 30
  %v261 = vpop.permute.xlu0 %260
  %264 = vrot.lane.b32.xlu0 %v234, 20
  %v265 = vpop.permute.xlu0 %264
  %v267 = vsel %vm132, %v128, %v253
  %vm268 = vcmask 162816
  %v269 = vsel %vm268, %v267, %v257
  %vm270 = vcmask 244736
  %v271 = vsel %vm270, %v269, %v261
  %vm272 = vcmask 326656
  %v273 = vsel %vm272, %v271, %v265
  %v274 = vld [vmem:[%s2] sm:$0xff]
  %v275 = vld [vmem:[%s2 + $0x8] sm:$0xff]
  %v276 = vld [vmem:[%s2 + $0x10] sm:$0xff]
  %v277 = vld [vmem:[%s2 + $0x18] sm:$0xff]
  %v278 = vld [vmem:[%s2 + $0x20] sm:$0xff]
  %v279 = vld [vmem:[%s2 + $0x28] sm:$0xff]
  %v280 = vld [vmem:[%s2 + $0x30] sm:$0x3]
  %v281 = vld [vmem:[%s2 + $0x38] sm:$0x1]
  %v282 = vld [vmem:[%s2 + $0x40] sm:$0xff]
  %v283 = vld [vmem:[%s2 + $0x48] sm:$0xff]
  %v284 = vld [vmem:[%s2 + $0x50] sm:$0xff]
  %v285 = vld [vmem:[%s2 + $0x58] sm:$0xff]
  %v286 = vld [vmem:[%s2 + $0x60] sm:$0x1]
  %v287 = vlaneseq
  %v288 = vshrl.u32 %v287, 7
  %v289 = vsub.s32 0, %v288
  %v290 = vrot.slane %v281, %v289
  %vm291 = vcmask 408576
  %v293 = vsel %vm291, %v273, 0
  %v296 = vsel %vm148, %v280, 0
  %298 = vmatprep.subr.mxu0 0.0
  %299 = vmatpush1.msra.mxu0 0.0
  %300 = vmatprep.subr.mxu0 0.0
  %301 = vmatpush1.msra.mxu0 0.0
  %302 = vmatprep.subr.mxu0 0.0
  %303 = vmatpush1.msra.mxu0 0.0
  %304 = vmatprep.subr.mxu0 0.0
  %305 = vmatpush1.msra.mxu0 0.0
  %306 = vmatprep.subr.mxu0 0.0
  %307 = vmatpush1.msra.mxu0 0.0
  %308 = vmatprep.subr.mxu0 0.0
  %309 = vmatpush1.msra.mxu0 0.0
  %310 = vmatprep.subr.mxu0 0.0
  %311 = vmatpush1.msra.mxu0 0.0
  %312 = vmatprep.subr.mxu0 0.0
  %313 = vmatpush1.msra.mxu0 0.0
  %314 = vmatprep.subr.mxu0 0.0
  %315 = vmatpush1.msra.mxu0 0.0
  %316 = vmatprep.subr.mxu0 0.0
  %317 = vmatpush1.msra.mxu0 %v296
  %318 = vmatprep.subr.mxu0 0.0
  %319 = vmatpush1.msra.mxu0 %v279
  %320 = vmatprep.subr.mxu0 0.0
  %321 = vmatpush1.msra.mxu0 %v278
  %322 = vmatprep.subr.mxu0 0.0
  %323 = vmatpush1.msra.mxu0 %v277
  %324 = vmatprep.subr.mxu0 0.0
  %325 = vmatpush1.msra.mxu0 %v276
  %326 = vmatprep.subr.mxu0 0.0
  %327 = vmatpush1.msra.mxu0 %v275
  %328 = vmatprep.subr.mxu0 0.0
  %329 = vmatpush1.msra.mxu0 %v274
  %330 = vmatprep.subr.mxu0 0.0
  %331 = vmatpush2.msra.mxu0 0.0
  %332 = vmatprep.subr.mxu0 0.0
  %333 = vmatpush2.msra.mxu0 0.0
  %334 = vmatprep.subr.mxu0 0.0
  %335 = vmatpush2.msra.mxu0 0.0
  %336 = vmatprep.subr.mxu0 0.0
  %337 = vmatpush2.msra.mxu0 0.0
  %338 = vmatprep.subr.mxu0 0.0
  %339 = vmatpush2.msra.mxu0 0.0
  %340 = vmatprep.subr.mxu0 0.0
  %341 = vmatpush2.msra.mxu0 0.0
  %342 = vmatprep.subr.mxu0 0.0
  %343 = vmatpush2.msra.mxu0 0.0
  %344 = vmatprep.subr.mxu0 0.0
  %345 = vmatpush2.msra.mxu0 0.0
  %346 = vmatprep.subr.mxu0 0.0
  %347 = vmatpush2.msra.mxu0 0.0
  %348 = vmatprep.subr.mxu0 0.0
  %349 = vmatpush2.msra.mxu0 0.0
  %350 = vmatprep.subr.mxu0 0.0
  %351 = vmatpush2.msra.mxu0 0.0
  %352 = vmatprep.subr.mxu0 0.0
  %353 = vmatpush2.msra.mxu0 0.0
  %354 = vmatprep.subr.mxu0 0.0
  %355 = vmatpush2.msra.mxu0 0.0
  %356 = vmatprep.subr.mxu0 0.0
  %357 = vmatpush2.msra.mxu0 0.0
  %358 = vmatprep.subr.mxu0 0.0
  %359 = vmatpush2.msra.mxu0 0.0
  %360 = vmatprep.subr.mxu0 0.0
  %361 = vmatpush2.msra.mxu0 0.0
  %362 = vmatprep.mubr.f32.mxu0 0.0
  %363 = vmatmul.mubr.f32.gmra.mxu0 %v293
  %v364 = vpop.f32.mrf.mxu0
  %v365 = vadd.f32 %v290, %v364
  %v366 = vpop.f32.mrf.mxu0
  %367 = vdwg.mxu0
  %v368 = vmax.f32 %v365, 0.0
  %v369 = vlaneseq
  %v370 = vshrl.u32 %v369, 7
  %v371 = vsub.s32 0, %v370
  %v372 = vrot.slane %v286, %v371
  %vm373 = vcmask 261120
  %v375 = vsel %vm373, %v368, 0
  %377 = vmatprep.subr.mxu0 0.0
  %378 = vmatpush1.msra.mxu0 0.0
  %379 = vmatprep.subr.mxu0 0.0
  %380 = vmatpush1.msra.mxu0 0.0
  %381 = vmatprep.subr.mxu0 0.0
  %382 = vmatpush1.msra.mxu0 0.0
  %383 = vmatprep.subr.mxu0 0.0
  %384 = vmatpush1.msra.mxu0 0.0
  %385 = vmatprep.subr.mxu0 0.0
  %386 = vmatpush1.msra.mxu0 0.0
  %387 = vmatprep.subr.mxu0 0.0
  %388 = vmatpush1.msra.mxu0 0.0
  %389 = vmatprep.subr.mxu0 0.0
  %390 = vmatpush1.msra.mxu0 0.0
  %391 = vmatprep.subr.mxu0 0.0
  %392 = vmatpush1.msra.mxu0 0.0
  %393 = vmatprep.subr.mxu0 0.0
  %394 = vmatpush1.msra.mxu0 0.0
  %395 = vmatprep.subr.mxu0 0.0
  %396 = vmatpush1.msra.mxu0 0.0
  %397 = vmatprep.subr.mxu0 0.0
  %398 = vmatpush1.msra.mxu0 0.0
  %399 = vmatprep.subr.mxu0 0.0
  %400 = vmatpush1.msra.mxu0 0.0
  %401 = vmatprep.subr.mxu0 0.0
  %402 = vmatpush1.msra.mxu0 %v285
  %403 = vmatprep.subr.mxu0 0.0
  %404 = vmatpush1.msra.mxu0 %v284
  %405 = vmatprep.subr.mxu0 0.0
  %406 = vmatpush1.msra.mxu0 %v283
  %407 = vmatprep.subr.mxu0 0.0
  %408 = vmatpush1.msra.mxu0 %v282
  %409 = vmatprep.subr.mxu0 0.0
  %410 = vmatpush2.msra.mxu0 0.0
  %411 = vmatprep.subr.mxu0 0.0
  %412 = vmatpush2.msra.mxu0 0.0
  %413 = vmatprep.subr.mxu0 0.0
  %414 = vmatpush2.msra.mxu0 0.0
  %415 = vmatprep.subr.mxu0 0.0
  %416 = vmatpush2.msra.mxu0 0.0
  %417 = vmatprep.subr.mxu0 0.0
  %418 = vmatpush2.msra.mxu0 0.0
  %419 = vmatprep.subr.mxu0 0.0
  %420 = vmatpush2.msra.mxu0 0.0
  %421 = vmatprep.subr.mxu0 0.0
  %422 = vmatpush2.msra.mxu0 0.0
  %423 = vmatprep.subr.mxu0 0.0
  %424 = vmatpush2.msra.mxu0 0.0
  %425 = vmatprep.subr.mxu0 0.0
  %426 = vmatpush2.msra.mxu0 0.0
  %427 = vmatprep.subr.mxu0 0.0
  %428 = vmatpush2.msra.mxu0 0.0
  %429 = vmatprep.subr.mxu0 0.0
  %430 = vmatpush2.msra.mxu0 0.0
  %431 = vmatprep.subr.mxu0 0.0
  %432 = vmatpush2.msra.mxu0 0.0
  %433 = vmatprep.subr.mxu0 0.0
  %434 = vmatpush2.msra.mxu0 0.0
  %435 = vmatprep.subr.mxu0 0.0
  %436 = vmatpush2.msra.mxu0 0.0
  %437 = vmatprep.subr.mxu0 0.0
  %438 = vmatpush2.msra.mxu0 0.0
  %439 = vmatprep.subr.mxu0 0.0
  %440 = vmatpush2.msra.mxu0 0.0
  %441 = vmatprep.mubr.f32.mxu0 0.0
  %442 = vmatmul.mubr.f32.gmra.mxu0 %v375
  %v443 = vpop.f32.mrf.mxu0
  %v444 = vadd.f32 %v372, %v443
  %v445 = vpop.f32.mrf.mxu0
  %446 = vdwg.mxu0
  %vm447 = vcmask 23552
  %448 = vst.msk [vmem:[%s3] sm:$0xff] %vm447, %v444
  // Predicated region
  $region14: #{tpu_custom_call.1} parent=0 // pred_check
    _
  $region15: #{tpu_custom_call.1} parent=0 // pred_check_branch
    %450 = sbr.rel (0) target = $region17
  $region16: #{tpu_custom_call.1} parent=0 // pred_region
    _
  $region17: #{tpu_custom_call.1} parent=0 // pred_fallthru
    _
  // Predicated region
  $region18: #{tpu_custom_call.1} parent=0 // pred_check
    _
  $region19: #{tpu_custom_call.1} parent=0 // pred_check_branch
    %452 = sbr.rel (0) target = $region21
  $region20: #{tpu_custom_call.1} parent=0 // pred_region
    _
  $region21: #{tpu_custom_call.1} parent=0 // pred_fallthru
    _

</llo_original>
